<compile_context>
chip_gen: v7x
topology: tpu7x:2x2x1
jax: 0.10.0
libtpu: 0.0.40
codegen_flags: <defaults>
</compile_context>

<pallas_src>
import functools
import math

import jax
import jax.numpy as jnp
from jax.experimental import pallas as pl
from jax.experimental.pallas import tpu as pltpu

BN_EPS = 1e-5
LANE = 128


def _round_up(x, m):
    return ((x + m - 1) // m) * m


def _fused_mlp_kernel(*refs, n_layers):
    """Whole MLP in one kernel body (single block, everything VMEM-resident).

    refs = (x_ref, w_0..w_{L-1}, gamma_0..gamma_{L-1}, beta_0..beta_{L-1}, o_ref)

    x_ref:      (N, Fpad_0)             f32
    w_l:        (Fpad_l, Fpad_{l+1})    bf16  (transposed, zero-padded)
    gamma_l:    (1, Fpad_{l+1})         f32   (zero-padded)
    beta_l:     (1, Fpad_{l+1})         f32   (zero-padded)
    o_ref:      (N, Fpad_L)             f32   (lane-dense; sliced outside)
    """
    x_ref = refs[0]
    w_refs = refs[1:1 + n_layers]
    g_refs = refs[1 + n_layers:1 + 2 * n_layers]
    b_refs = refs[1 + 2 * n_layers:1 + 3 * n_layers]
    o_ref = refs[1 + 3 * n_layers]

    h = x_ref[...]                                   # f32 (N, Fpad_0)
    inv_n = 1.0 / h.shape[0]                         # true batch size; batch axis is never padded

    for l in range(n_layers):
        # Linear (no bias: training-mode BN's mean subtraction absorbs it).
        # bf16 operands on the MXU, f32 accumulation.
        h = jnp.dot(h.astype(jnp.bfloat16), w_refs[l][...],
                    preferred_element_type=jnp.float32)

        # BatchNorm1d, training-mode batch statistics (biased 1/n variance),
        # applied as centered * scale + beta (one per-feature FMA).
        mean = jnp.sum(h, axis=0, keepdims=True) * inv_n            # (1, F)
        centered = h - mean
        var = jnp.sum(centered * centered, axis=0, keepdims=True) * inv_n
        scale = g_refs[l][...] * jax.lax.rsqrt(var + BN_EPS)        # (1, F)
        h = centered * scale + b_refs[l][...]

        if l < n_layers - 1:   # the module drops the final ReLU
            h = jnp.maximum(h, 0.0)

    o_ref[...] = h


def init_mlp_params(key, sizes):
    """Per-layer lane-dense packed parameters matching MLP(sizes, batch_norm=True).

    Weight l is stored transposed (in, out), zero-padded to its own
    (round_up(in,128), round_up(out,128)) and cast to bf16; BN gamma=1 / beta=0
    (PyTorch defaults), zero-padded in f32.  The Linear bias is intentionally
    omitted (exact no-op before training-mode BN).
    """
    n_layers = len(sizes) - 1
    fpads = tuple(_round_up(s, LANE) for s in sizes)

    ws, gammas, betas = [], [], []
    for s in range(n_layers):
        f_in, f_out = sizes[s], sizes[s + 1]
        fp_in, fp_out = fpads[s], fpads[s + 1]
        key, kw = jax.random.split(key)
        bound = 1.0 / math.sqrt(f_in)
        w = jax.random.uniform(kw, (f_in, f_out), jnp.float32, -bound, bound)
        w_pad = jnp.zeros((fp_in, fp_out), jnp.float32).at[:f_in, :f_out].set(w)
        ws.append(w_pad.astype(jnp.bfloat16))
        gammas.append(jnp.zeros((1, fp_out), jnp.float32).at[0, :f_out].set(1.0))
        betas.append(jnp.zeros((1, fp_out), jnp.float32))   # padded gamma/beta stay 0

    return {"w": tuple(ws), "gamma": tuple(gammas), "beta": tuple(betas)}


def _vmem_limit_bytes(n, fpads):
    n_layers = len(fpads) - 1
    b = 4 * n * fpads[0] + 4 * n * fpads[-1]
    for l in range(n_layers):
        b += 2 * fpads[l] * fpads[l + 1]          # bf16 weights
        b += 2 * 4 * fpads[l + 1]                 # gamma + beta
        b += 4 * n * fpads[l + 1]                 # live activation for this layer
    # Headroom for double-buffered DMAs / intermediates; clamp to sane range
    # (v5e scoped default is only 16 MiB; v7x physical VMEM is 64 MiB).
    return min(64 * 1024 * 1024, max(16 * 1024 * 1024, 4 * b))


@functools.partial(jax.jit, static_argnames=("sizes",))
def mlp_forward(x, params, *, sizes):
    """Run the whole MLP in one fused pallas_call.

    The feature pad of x and the final output slice live inside this jit, so
    they fuse with surrounding ops.  For best MXU occupancy feed N as a large
    multiple of 8 (f32) / 16 (bf16) — hundreds of rows if possible.
    """
    n, f_in = x.shape
    assert f_in == sizes[0], (f_in, sizes)
    n_layers = len(sizes) - 1
    fpads = tuple(_round_up(s, LANE) for s in sizes)

    # Pad input features to the lane-dense width (padded cols are zero).
    x_pad = jnp.zeros((n, fpads[0]), jnp.float32).at[:, :f_in].set(
        x.astype(jnp.float32))

    kernel = functools.partial(_fused_mlp_kernel, n_layers=n_layers)

    cost = pl.CostEstimate(
        flops=sum(2 * n * fpads[l] * fpads[l + 1] + 8 * n * fpads[l + 1]
                  for l in range(n_layers)),
        transcendentals=sum(fpads[l + 1] for l in range(n_layers)),
        bytes_accessed=(4 * n * fpads[0] + 4 * n * fpads[-1]
                        + sum(2 * fpads[l] * fpads[l + 1] + 8 * fpads[l + 1]
                              for l in range(n_layers))),
    )

    out_pad = pl.pallas_call(
        kernel,
        out_shape=jax.ShapeDtypeStruct((n, fpads[-1]), jnp.float32),
        in_specs=[pl.BlockSpec(memory_space=pltpu.MemorySpace.VMEM)]
                 * (1 + 3 * n_layers),
        out_specs=pl.BlockSpec(memory_space=pltpu.MemorySpace.VMEM),
        compiler_params=pltpu.CompilerParams(
            vmem_limit_bytes=_vmem_limit_bytes(n, fpads)),
        cost_estimate=cost,
    )(x_pad, *params["w"], *params["gamma"], *params["beta"])

    return out_pad[:, :sizes[-1]]


def _mlp_reference(x, params, sizes):
    """Pure-JAX reference with the same bf16-operand / f32-stat numerics."""
    n_layers = len(sizes) - 1
    fpads = tuple(_round_up(s, LANE) for s in sizes)
    n = x.shape[0]
    h = jnp.zeros((n, fpads[0]), jnp.float32).at[:, :sizes[0]].set(
        x.astype(jnp.float32))
    for l in range(n_layers):
        h = jnp.dot(h.astype(jnp.bfloat16), params["w"][l],
                    preferred_element_type=jnp.float32)
        mean = jnp.mean(h, axis=0, keepdims=True)
        var = jnp.mean((h - mean) ** 2, axis=0, keepdims=True)
        h = (h - mean) * (params["gamma"][l] * jax.lax.rsqrt(var + BN_EPS)) \
            + params["beta"][l]
        if l < n_layers - 1:
            h = jnp.maximum(h, 0.0)
    return h[:, :sizes[-1]]


if __name__ == "__main__":
    key = jax.random.PRNGKey(0)
    sizes = (32, 64, 16)          # MLP(sizes=[32, 64, 16])
    batch = 64                    # multiple of 8/16 for dense sublane layout

    kx, kp = jax.random.split(key)
    x = jax.random.normal(kx, (batch, sizes[0]), jnp.float32)
    params = init_mlp_params(kp, sizes)

    out = mlp_forward(x, params, sizes=sizes)
    jax.block_until_ready(out)

    assert out.shape == (batch, sizes[-1]), out.shape
    assert out.dtype == jnp.float32
    assert bool(jnp.all(jnp.isfinite(out)))

    ref = _mlp_reference(x, params, sizes)
    assert bool(jnp.allclose(out, ref, atol=1e-2, rtol=1e-2)), (
        float(jnp.max(jnp.abs(out - ref))))

    print("KERNEL_OK")
</pallas_src>

<mosaic_0001>
module attributes {stable_mosaic.version = 11 : i64} {
  func.func @_fused_mlp_kernel(%arg0: memref<64x128xf32, #tpu.memory_space<vmem>>, %arg1: memref<128x128xbf16, #tpu.memory_space<vmem>>, %arg2: memref<128x128xbf16, #tpu.memory_space<vmem>>, %arg3: memref<1x128xf32, #tpu.memory_space<vmem>>, %arg4: memref<1x128xf32, #tpu.memory_space<vmem>>, %arg5: memref<1x128xf32, #tpu.memory_space<vmem>>, %arg6: memref<1x128xf32, #tpu.memory_space<vmem>>, %arg7: memref<64x128xf32, #tpu.memory_space<vmem>>) attributes {dimension_semantics = [], scalar_prefetch = 0 : i64, scratch_operands = 0 : i64, tpu.core_type = #tpu.core_type<tc>} {
    %c0 = arith.constant 0 : index
    %c0_0 = arith.constant 0 : index
    %0 = vector.load %arg0[%c0, %c0_0] : memref<64x128xf32, #tpu.memory_space<vmem>>, vector<64x128xf32>
    %1 = arith.truncf %0 : vector<64x128xf32> to vector<64x128xbf16>
    %c0_1 = arith.constant 0 : index
    %c0_2 = arith.constant 0 : index
    %2 = vector.load %arg1[%c0_1, %c0_2] : memref<128x128xbf16, #tpu.memory_space<vmem>>, vector<128x128xbf16>
    %cst = arith.constant dense<0.000000e+00> : vector<64x128xf32>
    %3 = tpu.matmul %1, %2, %cst {dimension_numbers = #tpu.dot_dimension_numbers<[1], [0], [0], [1], [0, 0, 1, 1], [], []>} : vector<64x128xbf16>, vector<128x128xbf16>, vector<64x128xf32> -> vector<64x128xf32>
    %cst_3 = arith.constant dense<0.000000e+00> : vector<128xf32>
    %4 = vector.multi_reduction <add>, %3, %cst_3 [0] : vector<64x128xf32> to vector<128xf32>
    %5 = vector.shape_cast %4 : vector<128xf32> to vector<1x128xf32>
    %cst_4 = arith.constant 1.562500e-02 : f32
    %6 = vector.broadcast %cst_4 : f32 to vector<1x128xf32>
    %7 = arith.mulf %5, %6 : vector<1x128xf32>
    %8 = vector.broadcast %7 : vector<1x128xf32> to vector<64x128xf32>
    %9 = arith.subf %3, %8 : vector<64x128xf32>
    %10 = arith.mulf %9, %9 : vector<64x128xf32>
    %cst_5 = arith.constant dense<0.000000e+00> : vector<128xf32>
    %11 = vector.multi_reduction <add>, %10, %cst_5 [0] : vector<64x128xf32> to vector<128xf32>
    %12 = vector.shape_cast %11 : vector<128xf32> to vector<1x128xf32>
    %cst_6 = arith.constant 1.562500e-02 : f32
    %13 = vector.broadcast %cst_6 : f32 to vector<1x128xf32>
    %14 = arith.mulf %12, %13 : vector<1x128xf32>
    %c0_7 = arith.constant 0 : index
    %c0_8 = arith.constant 0 : index
    %15 = vector.load %arg3[%c0_7, %c0_8] : memref<1x128xf32, #tpu.memory_space<vmem>>, vector<1x128xf32>
    %cst_9 = arith.constant 9.99999974E-6 : f32
    %16 = vector.broadcast %cst_9 : f32 to vector<1x128xf32>
    %17 = arith.addf %14, %16 : vector<1x128xf32>
    %18 = math.rsqrt %17 : vector<1x128xf32>
    %19 = arith.mulf %15, %18 : vector<1x128xf32>
    %20 = vector.broadcast %19 : vector<1x128xf32> to vector<64x128xf32>
    %21 = arith.mulf %9, %20 : vector<64x128xf32>
    %c0_10 = arith.constant 0 : index
    %c0_11 = arith.constant 0 : index
    %22 = vector.load %arg5[%c0_10, %c0_11] : memref<1x128xf32, #tpu.memory_space<vmem>>, vector<1x128xf32>
    %23 = vector.broadcast %22 : vector<1x128xf32> to vector<64x128xf32>
    %24 = arith.addf %21, %23 : vector<64x128xf32>
    %cst_12 = arith.constant 0.000000e+00 : f32
    %25 = vector.broadcast %cst_12 : f32 to vector<64x128xf32>
    %26 = arith.maximumf %24, %25 : vector<64x128xf32>
    %27 = arith.truncf %26 : vector<64x128xf32> to vector<64x128xbf16>
    %c0_13 = arith.constant 0 : index
    %c0_14 = arith.constant 0 : index
    %28 = vector.load %arg2[%c0_13, %c0_14] : memref<128x128xbf16, #tpu.memory_space<vmem>>, vector<128x128xbf16>
    %cst_15 = arith.constant dense<0.000000e+00> : vector<64x128xf32>
    %29 = tpu.matmul %27, %28, %cst_15 {dimension_numbers = #tpu.dot_dimension_numbers<[1], [0], [0], [1], [0, 0, 1, 1], [], []>} : vector<64x128xbf16>, vector<128x128xbf16>, vector<64x128xf32> -> vector<64x128xf32>
    %cst_16 = arith.constant dense<0.000000e+00> : vector<128xf32>
    %30 = vector.multi_reduction <add>, %29, %cst_16 [0] : vector<64x128xf32> to vector<128xf32>
    %31 = vector.shape_cast %30 : vector<128xf32> to vector<1x128xf32>
    %cst_17 = arith.constant 1.562500e-02 : f32
    %32 = vector.broadcast %cst_17 : f32 to vector<1x128xf32>
    %33 = arith.mulf %31, %32 : vector<1x128xf32>
    %34 = vector.broadcast %33 : vector<1x128xf32> to vector<64x128xf32>
    %35 = arith.subf %29, %34 : vector<64x128xf32>
    %36 = arith.mulf %35, %35 : vector<64x128xf32>
    %cst_18 = arith.constant dense<0.000000e+00> : vector<128xf32>
    %37 = vector.multi_reduction <add>, %36, %cst_18 [0] : vector<64x128xf32> to vector<128xf32>
    %38 = vector.shape_cast %37 : vector<128xf32> to vector<1x128xf32>
    %cst_19 = arith.constant 1.562500e-02 : f32
    %39 = vector.broadcast %cst_19 : f32 to vector<1x128xf32>
    %40 = arith.mulf %38, %39 : vector<1x128xf32>
    %c0_20 = arith.constant 0 : index
    %c0_21 = arith.constant 0 : index
    %41 = vector.load %arg4[%c0_20, %c0_21] : memref<1x128xf32, #tpu.memory_space<vmem>>, vector<1x128xf32>
    %cst_22 = arith.constant 9.99999974E-6 : f32
    %42 = vector.broadcast %cst_22 : f32 to vector<1x128xf32>
    %43 = arith.addf %40, %42 : vector<1x128xf32>
    %44 = math.rsqrt %43 : vector<1x128xf32>
    %45 = arith.mulf %41, %44 : vector<1x128xf32>
    %46 = vector.broadcast %45 : vector<1x128xf32> to vector<64x128xf32>
    %47 = arith.mulf %35, %46 : vector<64x128xf32>
    %c0_23 = arith.constant 0 : index
    %c0_24 = arith.constant 0 : index
    %48 = vector.load %arg6[%c0_23, %c0_24] : memref<1x128xf32, #tpu.memory_space<vmem>>, vector<1x128xf32>
    %49 = vector.broadcast %48 : vector<1x128xf32> to vector<64x128xf32>
    %50 = arith.addf %47, %49 : vector<64x128xf32>
    %c0_25 = arith.constant 0 : index
    %c0_26 = arith.constant 0 : index
    %51 = vector.load %arg7[%c0_25, %c0_26] : memref<64x128xf32, #tpu.memory_space<vmem>>, vector<64x128xf32>
    tpu.vector_store %arg7[%c0_25, %c0_26], %50 {strides = array<i32>} : memref<64x128xf32, #tpu.memory_space<vmem>>, vector<64x128xf32>,
    return
  }
}

</mosaic_0001>

<llo_original>
// kernel: mlp_forward.1
$region0: #{mlp_forward.1}
  #allocation0 [shape = 'u32[]', space=smem, size = 0x4, offset = 0x4, fixed_abs, tag = 'smem constant byte address 0x4 - core index']
  #allocation1 [shape = 'u32[144,128]{1,0:T(1,128)}', space=vmem, size = 0x12000, scoped, tag = 'internal scratch']
  %s0 = inlined_call_operand.vmem [shape: f32[64,128], index: 0, kind: input, shape index: {}]
  %s1 = inlined_call_operand.vmem [shape: bf16[128,128], index: 1, kind: input, shape index: {}]
  %s2 = inlined_call_operand.vmem [shape: bf16[128,128], index: 2, kind: input, shape index: {}]
  %s3 = inlined_call_operand.vmem [shape: f32[1,128], index: 3, kind: input, shape index: {}]
  %s4 = inlined_call_operand.vmem [shape: f32[1,128], index: 4, kind: input, shape index: {}]
  %s5 = inlined_call_operand.vmem [shape: f32[1,128], index: 5, kind: input, shape index: {}]
  %s6 = inlined_call_operand.vmem [shape: f32[1,128], index: 6, kind: input, shape index: {}]
  %s7 = inlined_call_operand.vmem [shape: f32[64,128], index: 7, kind: output, shape index: {}]
  %s8 = sld [smem:[#allocation0]]
  $region38: #{mlp_forward.1} parent=0
    _
  %s10 = ssub.s32 1, %s8
  %s11 = scalar_select 0, %s10, %s8
  // Predicated region
  $region2: #{mlp_forward.1} parent=0 // pred_check
    _
  $region3: #{mlp_forward.1} parent=0 // pred_check_branch
    %13 = sbr.rel (0) target = $region5
  $region4: #{mlp_forward.1} parent=0 // pred_region
    _
  $region5: #{mlp_forward.1} parent=0 // pred_fallthru
    _
  // Predicated region
  $region6: #{mlp_forward.1} parent=0 // pred_check
    _
  $region7: #{mlp_forward.1} parent=0 // pred_check_branch
    %15 = sbr.rel (0) target = $region9
  $region8: #{mlp_forward.1} parent=0 // pred_region
    _
  $region9: #{mlp_forward.1} parent=0 // pred_fallthru
    _
  // Predicated region
  $region10: #{mlp_forward.1} parent=0 // pred_check
    _
  $region11: #{mlp_forward.1} parent=0 // pred_check_branch
    %17 = sbr.rel (0) target = $region13
  $region12: #{mlp_forward.1} parent=0 // pred_region
    _
  $region13: #{mlp_forward.1} parent=0 // pred_fallthru
    _
  // Predicated region
  $region14: #{mlp_forward.1} parent=0 // pred_check
    _
  $region15: #{mlp_forward.1} parent=0 // pred_check_branch
    %19 = sbr.rel (0) target = $region17
  $region16: #{mlp_forward.1} parent=0 // pred_region
    _
  $region17: #{mlp_forward.1} parent=0 // pred_fallthru
    _
  // Predicated region
  $region18: #{mlp_forward.1} parent=0 // pred_check
    _
  $region19: #{mlp_forward.1} parent=0 // pred_check_branch
    %21 = sbr.rel (0) target = $region21
  $region20: #{mlp_forward.1} parent=0 // pred_region
    _
  $region21: #{mlp_forward.1} parent=0 // pred_fallthru
    _
  // Predicated region
  $region22: #{mlp_forward.1} parent=0 // pred_check
    _
  $region23: #{mlp_forward.1} parent=0 // pred_check_branch
    %23 = sbr.rel (0) target = $region25
  $region24: #{mlp_forward.1} parent=0 // pred_region
    _
  $region25: #{mlp_forward.1} parent=0 // pred_fallthru
    _
  // Predicated region
  $region26: #{mlp_forward.1} parent=0 // pred_check
    _
  $region27: #{mlp_forward.1} parent=0 // pred_check_branch
    %25 = sbr.rel (0) target = $region29
  $region28: #{mlp_forward.1} parent=0 // pred_region
    _
  $region29: #{mlp_forward.1} parent=0 // pred_fallthru
    _
  %v27 = vld [vmem:[%s0] sm:$0xff]
  %v28 = vld [vmem:[%s0 + $0x8] sm:$0xff]
  %v29 = vld [vmem:[%s0 + $0x10] sm:$0xff]
  %v30 = vld [vmem:[%s0 + $0x18] sm:$0xff]
  %v31 = vld [vmem:[%s0 + $0x20] sm:$0xff]
  %v32 = vld [vmem:[%s0 + $0x28] sm:$0xff]
  %v33 = vld [vmem:[%s0 + $0x30] sm:$0xff]
  %v34 = vld [vmem:[%s0 + $0x38] sm:$0xff]
  %v35 = vpack.c.bf16 %v28, %v27
  %v36 = vpack.c.bf16 %v30, %v29
  %v37 = vpack.c.bf16 %v32, %v31
  %v38 = vpack.c.bf16 %v34, %v33
  %v39 = vld [vmem:[%s1] sm:$0xf]
  %v40 = vld [vmem:[%s1 + $0x4] sm:$0xf]
  %v41 = vld [vmem:[%s1 + $0x8] sm:$0xf]
  %v42 = vld [vmem:[%s1 + $0xc] sm:$0xf]
  %v43 = vld [vmem:[%s1 + $0x10] sm:$0xf]
  %v44 = vld [vmem:[%s1 + $0x14] sm:$0xf]
  %v45 = vld [vmem:[%s1 + $0x18] sm:$0xf]
  %v46 = vld [vmem:[%s1 + $0x1c] sm:$0xf]
  %v47 = vld [vmem:[%s1 + $0x20] sm:$0xf]
  %v48 = vld [vmem:[%s1 + $0x24] sm:$0xf]
  %v49 = vld [vmem:[%s1 + $0x28] sm:$0xf]
  %v50 = vld [vmem:[%s1 + $0x2c] sm:$0xf]
  %v51 = vld [vmem:[%s1 + $0x30] sm:$0xf]
  %v52 = vld [vmem:[%s1 + $0x34] sm:$0xf]
  %v53 = vld [vmem:[%s1 + $0x38] sm:$0xf]
  %v54 = vld [vmem:[%s1 + $0x3c] sm:$0xf]
  %v71 = vunpack.c.l.b16 %v39
  %v72 = vunpack.c.l.b16 %v40
  %v73 = vunpack.c.l.b16 %v41
  %v74 = vunpack.c.l.b16 %v42
  %v75 = vunpack.c.l.b16 %v43
  %v76 = vunpack.c.l.b16 %v44
  %v77 = vunpack.c.l.b16 %v45
  %v78 = vunpack.c.l.b16 %v46
  %v79 = vunpack.c.l.b16 %v47
  %v80 = vunpack.c.l.b16 %v48
  %v81 = vunpack.c.l.b16 %v49
  %v82 = vunpack.c.l.b16 %v50
  %v83 = vunpack.c.l.b16 %v51
  %v84 = vunpack.c.l.b16 %v52
  %v85 = vunpack.c.l.b16 %v53
  %v86 = vunpack.c.l.b16 %v54
  %v87 = vpack.c.b16 %v72, %v71
  %v88 = vpack.c.b16 %v74, %v73
  %v89 = vpack.c.b16 %v76, %v75
  %v90 = vpack.c.b16 %v78, %v77
  %v91 = vpack.c.b16 %v80, %v79
  %v92 = vpack.c.b16 %v82, %v81
  %v93 = vpack.c.b16 %v84, %v83
  %v94 = vpack.c.b16 %v86, %v85
  %103 = vmatprep.subr.bf16.mxu0 0
  %104 = vmatpush1.bf16.msra.mxu0 %v87
  %105 = vmatprep.subr.bf16.mxu0 0
  %106 = vmatpush1.bf16.msra.mxu0 %v88
  %107 = vmatprep.subr.bf16.mxu0 0
  %108 = vmatpush1.bf16.msra.mxu0 %v89
  %109 = vmatprep.subr.bf16.mxu0 0
  %110 = vmatpush1.bf16.msra.mxu0 %v90
  %111 = vmatprep.subr.bf16.mxu0 0
  %112 = vmatpush1.bf16.msra.mxu0 %v91
  %113 = vmatprep.subr.bf16.mxu0 0
  %114 = vmatpush1.bf16.msra.mxu0 %v92
  %115 = vmatprep.subr.bf16.mxu0 0
  %116 = vmatpush1.bf16.msra.mxu0 %v93
  %117 = vmatprep.subr.bf16.mxu0 0
  %118 = vmatpush1.bf16.msra.mxu0 %v94
  %119 = vmatprep.subr.bf16.mxu0 0
  %120 = vmatpush1.bf16.msra.mxu0 0
  %121 = vmatprep.subr.bf16.mxu0 0
  %122 = vmatpush1.bf16.msra.mxu0 0
  %123 = vmatprep.subr.bf16.mxu0 0
  %124 = vmatpush1.bf16.msra.mxu0 0
  %125 = vmatprep.subr.bf16.mxu0 0
  %126 = vmatpush1.bf16.msra.mxu0 0
  %127 = vmatprep.subr.bf16.mxu0 0
  %128 = vmatpush1.bf16.msra.mxu0 0
  %129 = vmatprep.subr.bf16.mxu0 0
  %130 = vmatpush1.bf16.msra.mxu0 0
  %131 = vmatprep.subr.bf16.mxu0 0
  %132 = vmatpush1.bf16.msra.mxu0 0
  %133 = vmatprep.subr.bf16.mxu0 0
  %134 = vmatpush1.bf16.msra.mxu0 0
  %135 = vmatprep.mubr.bf16.mxu0 0
  %136 = vmatmul.mubr.bf16.gmra.mrb[0].mxu0 %v35
  %v137 = vpop.f32.mrb[0].mxu0
  %v138 = vadd.f32 0.0, %v137
  %v139 = vpop.f32.mrb[0].mxu0
  %v140 = vpop.f32.mrb[0].mxu0
  %v141 = vadd.f32 0.0, %v140
  %v142 = vpop.f32.mrb[0].mxu0
  %143 = vmatprep.mubr.bf16.mxu0 0
  %144 = vmatmul.mubr.bf16.gmra.mrb[0].mxu0 %v36
  %v145 = vpop.f32.mrb[0].mxu0
  %v146 = vadd.f32 0.0, %v145
  %v147 = vpop.f32.mrb[0].mxu0
  %v148 = vpop.f32.mrb[0].mxu0
  %v149 = vadd.f32 0.0, %v148
  %v150 = vpop.f32.mrb[0].mxu0
  %151 = vmatprep.mubr.bf16.mxu0 0
  %152 = vmatmul.mubr.bf16.gmra.mrb[0].mxu0 %v37
  %v153 = vpop.f32.mrb[0].mxu0
  %v154 = vadd.f32 0.0, %v153
  %v155 = vpop.f32.mrb[0].mxu0
  %v156 = vpop.f32.mrb[0].mxu0
  %v157 = vadd.f32 0.0, %v156
  %v158 = vpop.f32.mrb[0].mxu0
  %159 = vmatprep.mubr.bf16.mxu0 0
  %160 = vmatmul.mubr.bf16.gmra.mrb[0].mxu0 %v38
  %v161 = vpop.f32.mrb[0].mxu0
  %v162 = vadd.f32 0.0, %v161
  %v163 = vpop.f32.mrb[0].mxu0
  %v164 = vpop.f32.mrb[0].mxu0
  %v165 = vadd.f32 0.0, %v164
  %v166 = vpop.f32.mrb[0].mxu0
  %167 = vdwg.mxu0
  %v168 = vadd.f32 %v138, %v141
  %v169 = vadd.f32 %v168, %v146
  %v170 = vadd.f32 %v169, %v149
  %v171 = vadd.f32 %v170, %v154
  %v172 = vadd.f32 %v171, %v157
  %v173 = vadd.f32 %v172, %v162
  %v174 = vadd.f32 %v173, %v165
  %v175 = vrot.slane %v174, 4
  %v176 = vadd.f32 %v174, %v175
  %v177 = vrot.slane %v176, 2
  %v178 = vadd.f32 %v176, %v177
  %v179 = vrot.slane %v178, 1
  %v180 = vadd.f32 %v178, %v179
  %v181 = vmul.f32 %v180, 0.015625
  %v182 = vsub.f32 %v138, %v181
  %v183 = vsub.f32 %v141, %v181
  %v184 = vsub.f32 %v146, %v181
  %v185 = vsub.f32 %v149, %v181
  %v186 = vsub.f32 %v154, %v181
  %v187 = vsub.f32 %v157, %v181
  %v188 = vsub.f32 %v162, %v181
  %v189 = vsub.f32 %v165, %v181
  %v190 = vmul.f32 %v182, %v182
  %v191 = vmul.f32 %v183, %v183
  %v192 = vmul.f32 %v184, %v184
  %v193 = vmul.f32 %v185, %v185
  %v194 = vmul.f32 %v186, %v186
  %v195 = vmul.f32 %v187, %v187
  %v196 = vmul.f32 %v188, %v188
  %v197 = vmul.f32 %v189, %v189
  %v198 = vadd.f32 %v190, %v191
  %v199 = vadd.f32 %v198, %v192
  %v200 = vadd.f32 %v199, %v193
  %v201 = vadd.f32 %v200, %v194
  %v202 = vadd.f32 %v201, %v195
  %v203 = vadd.f32 %v202, %v196
  %v204 = vadd.f32 %v203, %v197
  %v205 = vrot.slane %v204, 4
  %v206 = vadd.f32 %v204, %v205
  %v207 = vrot.slane %v206, 2
  %v208 = vadd.f32 %v206, %v207
  %v209 = vrot.slane %v208, 1
  %v210 = vadd.f32 %v208, %v209
  %v211 = vmul.f32 %v210, 0.015625
  %v212 = vld [vmem:[%s3] sm:$0x1]
  %v213 = vadd.f32 %v211, 1e-05
  %v214 = vrsqrt.pop %v213
  %v215 = vmul.f32 %v212, %v214
  %v217 = vlaneseq
  %v218 = vshrl.u32 %v217, 7
  %v219 = vsub.s32 0, %v218
  %v220 = vrot.slane %v215, %v219
  %v222 = vmul.f32 %v182, %v220
  %v223 = vmul.f32 %v183, %v220
  %v224 = vmul.f32 %v184, %v220
  %v225 = vmul.f32 %v185, %v220
  %v226 = vmul.f32 %v186, %v220
  %v227 = vmul.f32 %v187, %v220
  %v228 = vmul.f32 %v188, %v220
  %v229 = vmul.f32 %v189, %v220
  %v230 = vld [vmem:[%s5] sm:$0x1]
  %v232 = vlaneseq
  %v233 = vshrl.u32 %v232, 7
  %v234 = vsub.s32 0, %v233
  %v235 = vrot.slane %v230, %v234
  %v237 = vadd.f32 %v222, %v235
  %v238 = vadd.f32 %v223, %v235
  %v239 = vadd.f32 %v224, %v235
  %v240 = vadd.f32 %v225, %v235
  %v241 = vadd.f32 %v226, %v235
  %v242 = vadd.f32 %v227, %v235
  %v243 = vadd.f32 %v228, %v235
  %v244 = vadd.f32 %v229, %v235
  %v245 = vmax.f32 %v237, 0.0
  %v246 = vmax.f32 %v238, 0.0
  %v247 = vmax.f32 %v239, 0.0
  %v248 = vmax.f32 %v240, 0.0
  %v249 = vmax.f32 %v241, 0.0
  %v250 = vmax.f32 %v242, 0.0
  %v251 = vmax.f32 %v243, 0.0
  %v252 = vmax.f32 %v244, 0.0
  %v253 = vpack.c.bf16 %v246, %v245
  %v254 = vpack.c.bf16 %v248, %v247
  %v255 = vpack.c.bf16 %v250, %v249
  %v256 = vpack.c.bf16 %v252, %v251
  %v257 = vld [vmem:[%s2] sm:$0xf]
  %v258 = vld [vmem:[%s2 + $0x4] sm:$0xf]
  %v259 = vld [vmem:[%s2 + $0x8] sm:$0xf]
  %v260 = vld [vmem:[%s2 + $0xc] sm:$0xf]
  %v261 = vld [vmem:[%s2 + $0x10] sm:$0xf]
  %v262 = vld [vmem:[%s2 + $0x14] sm:$0xf]
  %v263 = vld [vmem:[%s2 + $0x18] sm:$0xf]
  %v264 = vld [vmem:[%s2 + $0x1c] sm:$0xf]
  %v265 = vld [vmem:[%s2 + $0x20] sm:$0xf]
  %v266 = vld [vmem:[%s2 + $0x24] sm:$0xf]
  %v267 = vld [vmem:[%s2 + $0x28] sm:$0xf]
  %v268 = vld [vmem:[%s2 + $0x2c] sm:$0xf]
  %v269 = vld [vmem:[%s2 + $0x30] sm:$0xf]
  %v270 = vld [vmem:[%s2 + $0x34] sm:$0xf]
  %v271 = vld [vmem:[%s2 + $0x38] sm:$0xf]
  %v272 = vld [vmem:[%s2 + $0x3c] sm:$0xf]
  %v289 = vunpack.c.l.b16 %v257
  %v290 = vunpack.c.l.b16 %v258
  %v291 = vunpack.c.l.b16 %v259
  %v292 = vunpack.c.l.b16 %v260
  %v293 = vunpack.c.l.b16 %v261
  %v294 = vunpack.c.l.b16 %v262
  %v295 = vunpack.c.l.b16 %v263
  %v296 = vunpack.c.l.b16 %v264
  %v297 = vunpack.c.l.b16 %v265
  %v298 = vunpack.c.l.b16 %v266
  %v299 = vunpack.c.l.b16 %v267
  %v300 = vunpack.c.l.b16 %v268
  %v301 = vunpack.c.l.b16 %v269
  %v302 = vunpack.c.l.b16 %v270
  %v303 = vunpack.c.l.b16 %v271
  %v304 = vunpack.c.l.b16 %v272
  %v305 = vpack.c.b16 %v290, %v289
  %v306 = vpack.c.b16 %v292, %v291
  %v307 = vpack.c.b16 %v294, %v293
  %v308 = vpack.c.b16 %v296, %v295
  %v309 = vpack.c.b16 %v298, %v297
  %v310 = vpack.c.b16 %v300, %v299
  %v311 = vpack.c.b16 %v302, %v301
  %v312 = vpack.c.b16 %v304, %v303
  %321 = vmatprep.subr.bf16.mxu0 0
  %322 = vmatpush1.bf16.msra.mxu0 %v305
  %323 = vmatprep.subr.bf16.mxu0 0
  %324 = vmatpush1.bf16.msra.mxu0 %v306
  %325 = vmatprep.subr.bf16.mxu0 0
  %326 = vmatpush1.bf16.msra.mxu0 %v307
  %327 = vmatprep.subr.bf16.mxu0 0
  %328 = vmatpush1.bf16.msra.mxu0 %v308
  %329 = vmatprep.subr.bf16.mxu0 0
  %330 = vmatpush1.bf16.msra.mxu0 %v309
  %331 = vmatprep.subr.bf16.mxu0 0
  %332 = vmatpush1.bf16.msra.mxu0 %v310
  %333 = vmatprep.subr.bf16.mxu0 0
  %334 = vmatpush1.bf16.msra.mxu0 %v311
  %335 = vmatprep.subr.bf16.mxu0 0
  %336 = vmatpush1.bf16.msra.mxu0 %v312
  %337 = vmatprep.subr.bf16.mxu0 0
  %338 = vmatpush1.bf16.msra.mxu0 0
  %339 = vmatprep.subr.bf16.mxu0 0
  %340 = vmatpush1.bf16.msra.mxu0 0
  %341 = vmatprep.subr.bf16.mxu0 0
  %342 = vmatpush1.bf16.msra.mxu0 0
  %343 = vmatprep.subr.bf16.mxu0 0
  %344 = vmatpush1.bf16.msra.mxu0 0
  %345 = vmatprep.subr.bf16.mxu0 0
  %346 = vmatpush1.bf16.msra.mxu0 0
  %347 = vmatprep.subr.bf16.mxu0 0
  %348 = vmatpush1.bf16.msra.mxu0 0
  %349 = vmatprep.subr.bf16.mxu0 0
  %350 = vmatpush1.bf16.msra.mxu0 0
  %351 = vmatprep.subr.bf16.mxu0 0
  %352 = vmatpush1.bf16.msra.mxu0 0
  %353 = vmatprep.mubr.bf16.mxu0 0
  %354 = vmatmul.mubr.bf16.gmra.mrb[0].mxu0 %v253
  %v355 = vpop.f32.mrb[0].mxu0
  %v356 = vadd.f32 0.0, %v355
  %v357 = vpop.f32.mrb[0].mxu0
  %v358 = vpop.f32.mrb[0].mxu0
  %v359 = vadd.f32 0.0, %v358
  %v360 = vpop.f32.mrb[0].mxu0
  %361 = vmatprep.mubr.bf16.mxu0 0
  %362 = vmatmul.mubr.bf16.gmra.mrb[0].mxu0 %v254
  %v363 = vpop.f32.mrb[0].mxu0
  %v364 = vadd.f32 0.0, %v363
  %v365 = vpop.f32.mrb[0].mxu0
  %v366 = vpop.f32.mrb[0].mxu0
  %v367 = vadd.f32 0.0, %v366
  %v368 = vpop.f32.mrb[0].mxu0
  %369 = vmatprep.mubr.bf16.mxu0 0
  %370 = vmatmul.mubr.bf16.gmra.mrb[0].mxu0 %v255
  %v371 = vpop.f32.mrb[0].mxu0
  %v372 = vadd.f32 0.0, %v371
  %v373 = vpop.f32.mrb[0].mxu0
  %v374 = vpop.f32.mrb[0].mxu0
  %v375 = vadd.f32 0.0, %v374
  %v376 = vpop.f32.mrb[0].mxu0
  %377 = vmatprep.mubr.bf16.mxu0 0
  %378 = vmatmul.mubr.bf16.gmra.mrb[0].mxu0 %v256
  %v379 = vpop.f32.mrb[0].mxu0
  %v380 = vadd.f32 0.0, %v379
  %v381 = vpop.f32.mrb[0].mxu0
  %v382 = vpop.f32.mrb[0].mxu0
  %v383 = vadd.f32 0.0, %v382
  %v384 = vpop.f32.mrb[0].mxu0
  %385 = vdwg.mxu0
  %v386 = vadd.f32 %v356, %v359
  %v387 = vadd.f32 %v386, %v364
  %v388 = vadd.f32 %v387, %v367
  %v389 = vadd.f32 %v388, %v372
  %v390 = vadd.f32 %v389, %v375
  %v391 = vadd.f32 %v390, %v380
  %v392 = vadd.f32 %v391, %v383
  %v393 = vrot.slane %v392, 4
  %v394 = vadd.f32 %v392, %v393
  %v395 = vrot.slane %v394, 2
  %v396 = vadd.f32 %v394, %v395
  %v397 = vrot.slane %v396, 1
  %v398 = vadd.f32 %v396, %v397
  %v399 = vmul.f32 %v398, 0.015625
  %v400 = vsub.f32 %v356, %v399
  %v401 = vsub.f32 %v359, %v399
  %v402 = vsub.f32 %v364, %v399
  %v403 = vsub.f32 %v367, %v399
  %v404 = vsub.f32 %v372, %v399
  %v405 = vsub.f32 %v375, %v399
  %v406 = vsub.f32 %v380, %v399
  %v407 = vsub.f32 %v383, %v399
  %v408 = vmul.f32 %v400, %v400
  %v409 = vmul.f32 %v401, %v401
  %v410 = vmul.f32 %v402, %v402
  %v411 = vmul.f32 %v403, %v403
  %v412 = vmul.f32 %v404, %v404
  %v413 = vmul.f32 %v405, %v405
  %v414 = vmul.f32 %v406, %v406
  %v415 = vmul.f32 %v407, %v407
  %v416 = vadd.f32 %v408, %v409
  %v417 = vadd.f32 %v416, %v410
  %v418 = vadd.f32 %v417, %v411
  %v419 = vadd.f32 %v418, %v412
  %v420 = vadd.f32 %v419, %v413
  %v421 = vadd.f32 %v420, %v414
  %v422 = vadd.f32 %v421, %v415
  %v423 = vrot.slane %v422, 4
  %v424 = vadd.f32 %v422, %v423
  %v425 = vrot.slane %v424, 2
  %v426 = vadd.f32 %v424, %v425
  %v427 = vrot.slane %v426, 1
  %v428 = vadd.f32 %v426, %v427
  %v429 = vmul.f32 %v428, 0.015625
  %v430 = vld [vmem:[%s4] sm:$0x1]
  %v431 = vadd.f32 %v429, 1e-05
  %v432 = vrsqrt.pop %v431
  %v433 = vmul.f32 %v430, %v432
  %v435 = vlaneseq
  %v436 = vshrl.u32 %v435, 7
  %v437 = vsub.s32 0, %v436
  %v438 = vrot.slane %v433, %v437
  %v440 = vmul.f32 %v400, %v438
  %v441 = vmul.f32 %v401, %v438
  %v442 = vmul.f32 %v402, %v438
  %v443 = vmul.f32 %v403, %v438
  %v444 = vmul.f32 %v404, %v438
  %v445 = vmul.f32 %v405, %v438
  %v446 = vmul.f32 %v406, %v438
  %v447 = vmul.f32 %v407, %v438
  %v448 = vld [vmem:[%s6] sm:$0x1]
  %v450 = vlaneseq
  %v451 = vshrl.u32 %v450, 7
  %v452 = vsub.s32 0, %v451
  %v453 = vrot.slane %v448, %v452
  %v455 = vadd.f32 %v440, %v453
  %v456 = vadd.f32 %v441, %v453
  %v457 = vadd.f32 %v442, %v453
  %v458 = vadd.f32 %v443, %v453
  %v459 = vadd.f32 %v444, %v453
  %v460 = vadd.f32 %v445, %v453
  %v461 = vadd.f32 %v446, %v453
  %v462 = vadd.f32 %v447, %v453
  %463 = vst [vmem:[%s7] sm:$0xff] %v455
  %464 = vst [vmem:[%s7 + $0x8] sm:$0xff] %v456
  %465 = vst [vmem:[%s7 + $0x10] sm:$0xff] %v457
  %466 = vst [vmem:[%s7 + $0x18] sm:$0xff] %v458
  %467 = vst [vmem:[%s7 + $0x20] sm:$0xff] %v459
  %468 = vst [vmem:[%s7 + $0x28] sm:$0xff] %v460
  %469 = vst [vmem:[%s7 + $0x30] sm:$0xff] %v461
  %470 = vst [vmem:[%s7 + $0x38] sm:$0xff] %v462
  // Predicated region
  $region30: #{mlp_forward.1} parent=0 // pred_check
    _
  $region31: #{mlp_forward.1} parent=0 // pred_check_branch
    %472 = sbr.rel (0) target = $region33
  $region32: #{mlp_forward.1} parent=0 // pred_region
    _
  $region33: #{mlp_forward.1} parent=0 // pred_fallthru
    _
  // Predicated region
  $region34: #{mlp_forward.1} parent=0 // pred_check
    _
  $region35: #{mlp_forward.1} parent=0 // pred_check_branch
    %474 = sbr.rel (0) target = $region37
  $region36: #{mlp_forward.1} parent=0 // pred_region
    _
  $region37: #{mlp_forward.1} parent=0 // pred_fallthru
    _

</llo_original>
